<compile_context>
chip_gen: v5e
topology: v5e:2x2
jax: 0.10.0
libtpu: 0.0.40
codegen_flags: <defaults>
</compile_context>

<pallas_src>
import functools

import jax
import jax.numpy as jnp
from jax.experimental import pallas as pl
from jax.experimental.pallas import tpu as pltpu


def _focal_kernel(x_ref, t_ref, out_ref, acc_ref, *, hw, num_classes, gamma,
                  ignore_index):
    """Accumulates sum(-(1 - p_t)^gamma * log p_t) and the valid-pixel count.

    x_ref  : (C, L) logits block (lane axis = flattened spatial)
    t_ref  : (1, L) int32 target block
    out_ref: SMEM f32[2] -> [0] loss sum, [1] valid count (written at last step)
    acc_ref: VMEM f32[2, L] per-lane partial accumulator (persists across grid)
    """
    n_i = pl.program_id(0)
    j = pl.program_id(1)
    first = jnp.logical_and(n_i == 0, j == 0)
    last = jnp.logical_and(n_i == pl.num_programs(0) - 1,
                           j == pl.num_programs(1) - 1)

    @pl.when(first)
    def _init():
        acc_ref[...] = jnp.zeros_like(acc_ref)
        out_ref[0] = jnp.float32(0.0)
        out_ref[1] = jnp.float32(0.0)

    x = x_ref[...].astype(jnp.float32)       # (C, L)  cast in-register
    t = t_ref[...].astype(jnp.int32)         # (1, L)
    lanes = x.shape[1]

    # Lane mask for the (possibly padded) tail block + ignore_index mask.
    lane_ids = jax.lax.broadcasted_iota(jnp.int32, (1, lanes), 1)
    in_bounds = (j * lanes + lane_ids) < hw
    valid = jnp.logical_and(t != ignore_index, in_bounds)
    tc = jnp.where(valid, t, 0)              # clamp; masked out below anyway

    # Numerically-stable softmax / log-softmax at the target class,
    # unrolled over the (small, static) channel count.
    m = x[0:1, :]
    for c in range(1, num_classes):
        m = jnp.maximum(m, x[c:c + 1, :])
    s = jnp.zeros_like(m)
    x_t = jnp.zeros_like(m)
    for c in range(num_classes):
        xc = x[c:c + 1, :]
        s = s + jnp.exp(xc - m)
        x_t = jnp.where(tc == c, xc, x_t)

    logp_t = (x_t - m) - jnp.log(s)          # log_softmax at target class
    p_t = jnp.exp(logp_t)                    # softmax at target class
    focal = ((1.0 - p_t) ** gamma) * logp_t  # gamma=2 -> integer_pow (VPU only)

    # Per-lane partial accumulation (elementwise; no cross-lane reduce here).
    acc_ref[0:1, :] += jnp.where(valid, -focal, 0.0)
    acc_ref[1:2, :] += jnp.where(valid, 1.0, 0.0)

    @pl.when(last)
    def _finalize():
        out_ref[0] = jnp.sum(acc_ref[0:1, :])
        out_ref[1] = jnp.sum(acc_ref[1:2, :])


def _pick_lane_tile(hw: int, num_classes: int, itemsize: int = 4) -> int:
    """Largest lane tile (multiple of 128) whose double-buffered inputs fit a
    conservative VMEM budget that is safe on v5e / v6e / v7x."""
    budget = 8 * 1024 * 1024                       # bytes for pipelined inputs
    per_lane = 2 * (num_classes * itemsize + 4)    # 2 buffers * (logits + int32 tgt)
    max_l = max(128, (budget // per_lane) // 128 * 128)
    hw_pad = pl.cdiv(hw, 128) * 128
    return min(hw_pad, max_l)


def focal_loss_2d(inputs, targets, *, gamma=2, ignore_index=255):
    """JAX/Pallas equivalent of FocalLoss2d.forward (weight=None, size_average=True).

    inputs : (N, C, H, W) float logits
    targets: (N, H, W)    integer class indices (ignore_index pixels skipped)
    returns scalar float32 loss
    """
    N, C, H, W = inputs.shape
    hw = H * W

    x = inputs.reshape(N, C, hw)                     # free contiguous reshape
    t = targets.astype(jnp.int32).reshape(N, 1, hw)  # keep integer all the way

    lane_tile = _pick_lane_tile(hw, C, jnp.dtype(inputs.dtype).itemsize)
    grid = (N, pl.cdiv(hw, lane_tile))

    kernel = functools.partial(
        _focal_kernel, hw=hw, num_classes=C, gamma=gamma,
        ignore_index=ignore_index)

    sums = pl.pallas_call(
        kernel,
        out_shape=jax.ShapeDtypeStruct((2,), jnp.float32),
        grid=grid,
        in_specs=[
            pl.BlockSpec((pl.Squeezed(), C, lane_tile), lambda n, j: (n, 0, j)),
            pl.BlockSpec((pl.Squeezed(), 1, lane_tile), lambda n, j: (n, 0, j)),
        ],
        out_specs=pl.BlockSpec(memory_space=pltpu.MemorySpace.SMEM),
        scratch_shapes=[pltpu.VMEM((2, lane_tile), jnp.float32)],
        compiler_params=pltpu.CompilerParams(
            dimension_semantics=("arbitrary", "arbitrary"),
            vmem_limit_bytes=32 * 1024 * 1024),
    )(x, t)

    # weight=None, size_average=True  ->  sum of -focal terms / #valid pixels.
    return sums[0] / sums[1]


def _reference(inputs, targets, gamma=2, ignore_index=255):
    """Pure-JAX reference mirroring FocalLoss2d.forward."""
    x = inputs.astype(jnp.float32)
    logp = jax.nn.log_softmax(x, axis=1)
    p = jnp.exp(logp)
    mod = ((1.0 - p) ** gamma) * logp
    valid = targets != ignore_index
    tc = jnp.where(valid, targets, 0).astype(jnp.int32)
    gathered = jnp.take_along_axis(mod, tc[:, None, :, :], axis=1)[:, 0]
    return -jnp.sum(jnp.where(valid, gathered, 0.0)) / jnp.sum(valid)


if __name__ == "__main__":
    key = jax.random.PRNGKey(0)
    k1, k2, k3 = jax.random.split(key, 3)

    N, C, H, W = 2, 4, 16, 16
    logits = jax.random.normal(k1, (N, C, H, W), dtype=jnp.float32)
    targets = jax.random.randint(k2, (N, H, W), 0, C, dtype=jnp.int32)
    # Sprinkle in some ignore_index pixels to exercise the mask path.
    ignore_mask = jax.random.bernoulli(k3, p=0.1, shape=(N, H, W))
    targets = jnp.where(ignore_mask, 255, targets)

    loss = jax.jit(focal_loss_2d)(logits, targets)
    loss = jax.block_until_ready(loss)

    ref = _reference(logits, targets)
    assert jnp.isfinite(loss), "loss is not finite"
    assert jnp.allclose(loss, ref, rtol=1e-5, atol=1e-5), (loss, ref)

    print("KERNEL_OK")
</pallas_src>

<mosaic_0001>
module attributes {stable_mosaic.version = 11 : i64} {
  func.func @_focal_kernel(%arg0: i32, %arg1: i32, %arg2: memref<1x4x256xf32, #tpu.memory_space<vmem>>, %arg3: memref<1x1x256xi32, #tpu.memory_space<vmem>>, %arg4: memref<2xf32, #tpu.memory_space<smem>>, %arg5: memref<2x256xf32, #tpu.memory_space<vmem>>) attributes {dimension_semantics = [#tpu.dimension_semantics<arbitrary>, #tpu.dimension_semantics<arbitrary>], iteration_bounds = array<i64: 2, 1>, scalar_prefetch = 0 : i64, scratch_operands = 1 : i64, tpu.core_type = #tpu.core_type<tc>, window_params = [{transform_indices = @transform_0, window_bounds = array<i64: 1, 4, 256>}, {transform_indices = @transform_1, window_bounds = array<i64: 1, 1, 256>}, {transform_indices = @transform_2, window_bounds = array<i64: 2>}]} {
    %c0_i32 = arith.constant 0 : i32
    %0 = arith.cmpi eq, %arg0, %c0_i32 : i32
    %c0_i32_0 = arith.constant 0 : i32
    %1 = arith.cmpi eq, %arg1, %c0_i32_0 : i32
    %2 = arith.andi %0, %1 : i1
    %c1_i32 = arith.constant 1 : i32
    %3 = arith.cmpi eq, %arg0, %c1_i32 : i32
    %c0_i32_1 = arith.constant 0 : i32
    %4 = arith.cmpi eq, %arg1, %c0_i32_1 : i32
    %5 = arith.andi %3, %4 : i1
    %6 = arith.extui %2 : i1 to i32
    %c0_i32_2 = arith.constant 0 : i32
    %7 = arith.cmpi ne, %6, %c0_i32_2 : i32
    scf.if %7 {
      %cst_26 = arith.constant 0.000000e+00 : f32
      %83 = vector.broadcast %cst_26 : f32 to vector<2x256xf32>
      %c0_27 = arith.constant 0 : index
      %c0_28 = arith.constant 0 : index
      %84 = vector.load %arg5[%c0_27, %c0_28] : memref<2x256xf32, #tpu.memory_space<vmem>>, vector<2x256xf32>
      tpu.vector_store %arg5[%c0_27, %c0_28], %83 {strides = array<i32>} : memref<2x256xf32, #tpu.memory_space<vmem>>, vector<2x256xf32>,
      %cst_29 = arith.constant 0.000000e+00 : f32
      %c0_30 = arith.constant 0 : index
      %85 = memref.load %arg4[%c0_30] : memref<2xf32, #tpu.memory_space<smem>>
      memref.store %cst_29, %arg4[%c0_30] : memref<2xf32, #tpu.memory_space<smem>>
      %cst_31 = arith.constant 0.000000e+00 : f32
      %c1_32 = arith.constant 1 : index
      %86 = memref.load %arg4[%c1_32] : memref<2xf32, #tpu.memory_space<smem>>
      memref.store %cst_31, %arg4[%c1_32] : memref<2xf32, #tpu.memory_space<smem>>
    } else {
    }
    %c0 = arith.constant 0 : index
    %c0_3 = arith.constant 0 : index
    %c0_4 = arith.constant 0 : index
    %8 = vector.load %arg2[%c0, %c0_3, %c0_4] : memref<1x4x256xf32, #tpu.memory_space<vmem>>, vector<1x4x256xf32>
    %9 = vector.shape_cast %8 : vector<1x4x256xf32> to vector<4x256xf32>
    %c0_5 = arith.constant 0 : index
    %c0_6 = arith.constant 0 : index
    %c0_7 = arith.constant 0 : index
    %10 = vector.load %arg3[%c0_5, %c0_6, %c0_7] : memref<1x1x256xi32, #tpu.memory_space<vmem>>, vector<1x1x256xi32>
    %11 = vector.shape_cast %10 : vector<1x1x256xi32> to vector<1x256xi32>
    %12 = tpu.iota {dimensions = array<i32: 1>} : vector<1x256xi32>
    %c256_i32 = arith.constant 256 : i32
    %13 = arith.muli %arg1, %c256_i32 : i32
    %14 = vector.broadcast %13 : i32 to vector<1x256xi32>
    %15 = arith.addi %14, %12 : vector<1x256xi32>
    %c256_i32_8 = arith.constant 256 : i32
    %16 = vector.broadcast %c256_i32_8 : i32 to vector<1x256xi32>
    %17 = arith.cmpi slt, %15, %16 : vector<1x256xi32>
    %c255_i32 = arith.constant 255 : i32
    %18 = vector.broadcast %c255_i32 : i32 to vector<1x256xi32>
    %19 = arith.cmpi ne, %11, %18 : vector<1x256xi32>
    %20 = arith.andi %19, %17 : vector<1x256xi1>
    %c0_i32_9 = arith.constant 0 : i32
    %21 = vector.broadcast %c0_i32_9 : i32 to vector<1x256xi32>
    %22 = arith.select %20, %11, %21 : vector<1x256xi1>, vector<1x256xi32>
    %23 = vector.extract_strided_slice %9 {offsets = [0, 0], sizes = [1, 256], strides = [1, 1]} : vector<4x256xf32> to vector<1x256xf32>
    %24 = vector.extract_strided_slice %9 {offsets = [1, 0], sizes = [1, 256], strides = [1, 1]} : vector<4x256xf32> to vector<1x256xf32>
    %25 = arith.maximumf %23, %24 : vector<1x256xf32>
    %26 = vector.extract_strided_slice %9 {offsets = [2, 0], sizes = [1, 256], strides = [1, 1]} : vector<4x256xf32> to vector<1x256xf32>
    %27 = arith.maximumf %25, %26 : vector<1x256xf32>
    %28 = vector.extract_strided_slice %9 {offsets = [3, 0], sizes = [1, 256], strides = [1, 1]} : vector<4x256xf32> to vector<1x256xf32>
    %29 = arith.maximumf %27, %28 : vector<1x256xf32>
    %cst = arith.constant 0.000000e+00 : f32
    %30 = vector.broadcast %cst : f32 to vector<1x256xf32>
    %cst_10 = arith.constant 0.000000e+00 : f32
    %31 = vector.broadcast %cst_10 : f32 to vector<1x256xf32>
    %32 = vector.extract_strided_slice %9 {offsets = [0, 0], sizes = [1, 256], strides = [1, 1]} : vector<4x256xf32> to vector<1x256xf32>
    %33 = arith.subf %32, %29 : vector<1x256xf32>
    %34 = math.exp %33 : vector<1x256xf32>
    %35 = arith.addf %30, %34 : vector<1x256xf32>
    %c0_i32_11 = arith.constant 0 : i32
    %36 = vector.broadcast %c0_i32_11 : i32 to vector<1x256xi32>
    %37 = arith.cmpi eq, %22, %36 : vector<1x256xi32>
    %38 = arith.select %37, %32, %31 : vector<1x256xi1>, vector<1x256xf32>
    %39 = vector.extract_strided_slice %9 {offsets = [1, 0], sizes = [1, 256], strides = [1, 1]} : vector<4x256xf32> to vector<1x256xf32>
    %40 = arith.subf %39, %29 : vector<1x256xf32>
    %41 = math.exp %40 : vector<1x256xf32>
    %42 = arith.addf %35, %41 : vector<1x256xf32>
    %c1_i32_12 = arith.constant 1 : i32
    %43 = vector.broadcast %c1_i32_12 : i32 to vector<1x256xi32>
    %44 = arith.cmpi eq, %22, %43 : vector<1x256xi32>
    %45 = arith.select %44, %39, %38 : vector<1x256xi1>, vector<1x256xf32>
    %46 = vector.extract_strided_slice %9 {offsets = [2, 0], sizes = [1, 256], strides = [1, 1]} : vector<4x256xf32> to vector<1x256xf32>
    %47 = arith.subf %46, %29 : vector<1x256xf32>
    %48 = math.exp %47 : vector<1x256xf32>
    %49 = arith.addf %42, %48 : vector<1x256xf32>
    %c2_i32 = arith.constant 2 : i32
    %50 = vector.broadcast %c2_i32 : i32 to vector<1x256xi32>
    %51 = arith.cmpi eq, %22, %50 : vector<1x256xi32>
    %52 = arith.select %51, %46, %45 : vector<1x256xi1>, vector<1x256xf32>
    %53 = vector.extract_strided_slice %9 {offsets = [3, 0], sizes = [1, 256], strides = [1, 1]} : vector<4x256xf32> to vector<1x256xf32>
    %54 = arith.subf %53, %29 : vector<1x256xf32>
    %55 = math.exp %54 : vector<1x256xf32>
    %56 = arith.addf %49, %55 : vector<1x256xf32>
    %c3_i32 = arith.constant 3 : i32
    %57 = vector.broadcast %c3_i32 : i32 to vector<1x256xi32>
    %58 = arith.cmpi eq, %22, %57 : vector<1x256xi32>
    %59 = arith.select %58, %53, %52 : vector<1x256xi1>, vector<1x256xf32>
    %60 = arith.subf %59, %29 : vector<1x256xf32>
    %61 = math.log %56 : vector<1x256xf32>
    %62 = arith.subf %60, %61 : vector<1x256xf32>
    %63 = math.exp %62 : vector<1x256xf32>
    %cst_13 = arith.constant 1.000000e+00 : f32
    %64 = vector.broadcast %cst_13 : f32 to vector<1x256xf32>
    %65 = arith.subf %64, %63 : vector<1x256xf32>
    %66 = arith.mulf %65, %65 : vector<1x256xf32>
    %67 = arith.mulf %66, %62 : vector<1x256xf32>
    %c0_14 = arith.constant 0 : index
    %c0_15 = arith.constant 0 : index
    %68 = vector.load %arg5[%c0_14, %c0_15] : memref<2x256xf32, #tpu.memory_space<vmem>>, vector<1x256xf32>
    %cst_16 = arith.constant 0.000000e+00 : f32
    %69 = vector.broadcast %cst_16 : f32 to vector<1x256xf32>
    %70 = arith.subf %69, %67 : vector<1x256xf32>
    %cst_17 = arith.constant 0.000000e+00 : f32
    %71 = vector.broadcast %cst_17 : f32 to vector<1x256xf32>
    %72 = arith.select %20, %70, %71 : vector<1x256xi1>, vector<1x256xf32>
    %73 = arith.addf %68, %72 : vector<1x256xf32>
    %c0_18 = arith.constant 0 : index
    %c0_19 = arith.constant 0 : index
    %74 = vector.load %arg5[%c0_18, %c0_19] : memref<2x256xf32, #tpu.memory_space<vmem>>, vector<1x256xf32>
    tpu.vector_store %arg5[%c0_18, %c0_19], %73 {strides = array<i32>} : memref<2x256xf32, #tpu.memory_space<vmem>>, vector<1x256xf32>,
    %c1 = arith.constant 1 : index
    %c0_20 = arith.constant 0 : index
    %75 = vector.load %arg5[%c1, %c0_20] : memref<2x256xf32, #tpu.memory_space<vmem>>, vector<1x256xf32>
    %cst_21 = arith.constant 1.000000e+00 : f32
    %cst_22 = arith.constant 0.000000e+00 : f32
    %76 = vector.broadcast %cst_21 : f32 to vector<1x256xf32>
    %77 = vector.broadcast %cst_22 : f32 to vector<1x256xf32>
    %78 = arith.select %20, %76, %77 : vector<1x256xi1>, vector<1x256xf32>
    %79 = arith.addf %75, %78 : vector<1x256xf32>
    %c1_23 = arith.constant 1 : index
    %c0_24 = arith.constant 0 : index
    %80 = vector.load %arg5[%c1_23, %c0_24] : memref<2x256xf32, #tpu.memory_space<vmem>>, vector<1x256xf32>
    tpu.vector_store %arg5[%c1_23, %c0_24], %79 {strides = array<i32>} : memref<2x256xf32, #tpu.memory_space<vmem>>, vector<1x256xf32>,
    %81 = arith.extui %5 : i1 to i32
    %c0_i32_25 = arith.constant 0 : i32
    %82 = arith.cmpi ne, %81, %c0_i32_25 : i32
    scf.if %82 {
      %c0_26 = arith.constant 0 : index
      %c0_27 = arith.constant 0 : index
      %83 = vector.load %arg5[%c0_26, %c0_27] : memref<2x256xf32, #tpu.memory_space<vmem>>, vector<1x256xf32>
      %84 = vector.shape_cast %83 : vector<1x256xf32> to vector<1x1x256xf32>
      %cst_28 = arith.constant dense<0.000000e+00> : vector<1xf32>
      %85 = vector.multi_reduction <add>, %84, %cst_28 [1, 2] : vector<1x1x256xf32> to vector<1xf32>
      %86 = vector.shape_cast %85 : vector<1xf32> to vector<1x1x1xf32>
      %87 = vector.extract %86[0, 0, 0] : f32 from vector<1x1x1xf32>
      %c0_29 = arith.constant 0 : index
      %88 = memref.load %arg4[%c0_29] : memref<2xf32, #tpu.memory_space<smem>>
      memref.store %87, %arg4[%c0_29] : memref<2xf32, #tpu.memory_space<smem>>
      %c1_30 = arith.constant 1 : index
      %c0_31 = arith.constant 0 : index
      %89 = vector.load %arg5[%c1_30, %c0_31] : memref<2x256xf32, #tpu.memory_space<vmem>>, vector<1x256xf32>
      %90 = vector.shape_cast %89 : vector<1x256xf32> to vector<1x1x256xf32>
      %cst_32 = arith.constant dense<0.000000e+00> : vector<1xf32>
      %91 = vector.multi_reduction <add>, %90, %cst_32 [1, 2] : vector<1x1x256xf32> to vector<1xf32>
      %92 = vector.shape_cast %91 : vector<1xf32> to vector<1x1x1xf32>
      %93 = vector.extract %92[0, 0, 0] : f32 from vector<1x1x1xf32>
      %c1_33 = arith.constant 1 : index
      %94 = memref.load %arg4[%c1_33] : memref<2xf32, #tpu.memory_space<smem>>
      memref.store %93, %arg4[%c1_33] : memref<2xf32, #tpu.memory_space<smem>>
    } else {
    }
    return
  }
  func.func @transform_0(%arg0: i32, %arg1: i32) -> (i32, i32, i32) {
    %c0_i32 = arith.constant 0 : i32
    %c0_i32_0 = arith.constant 0 : i32
    return %arg0, %c0_i32, %arg1 : i32, i32, i32
  }
  func.func @transform_1(%arg0: i32, %arg1: i32) -> (i32, i32, i32) {
    %c0_i32 = arith.constant 0 : i32
    %c0_i32_0 = arith.constant 0 : i32
    return %arg0, %c0_i32, %arg1 : i32, i32, i32
  }
  func.func @transform_2(%arg0: i32, %arg1: i32) -> i32 {
    %c0_i32 = arith.constant 0 : i32
    %c0_i32_0 = arith.constant 0 : i32
    return %c0_i32 : i32
  }
}

</mosaic_0001>

<llo_original>
// kernel: focal_loss_2d.1
$region0: #{focal_loss_2d.1}
  #allocation0 [shape = 'u32[]', space=smem, size = 0x4, offset = 0x4, fixed_abs, tag = 'smem constant byte address 0x4 - core index']
  #allocation1 [shape = 'u32[72,128]{1,0:T(1,128)}', space=vmem, size = 0x9000, scoped, tag = 'internal scratch']
  #allocation2 [shape = 'f32[2,256]{1,0:T(2,128)}', space=vmem, size = 0x800, scoped, tag = 'scratch operand']
  %s0 = inlined_call_operand.vmem [shape: f32[2,4,256], index: 0, kind: input, shape index: {}]
  %s1 = inlined_call_operand.vmem [shape: s32[2,1,256], index: 1, kind: input, shape index: {}]
  %s2 = inlined_call_operand.vmem [shape: f32[2], index: 2, kind: output, shape index: {}]
  %s3 = sld [smem:[#allocation0]]
  $region49: #{focal_loss_2d.1} parent=0
    _
  %s5 = ssub.s32 1, %s3
  %s6 = scalar_select 0, %s5, %s3
  $region1: #{focal_loss_2d.1} parent=0
    #allocation3 [shape = 'u8[512]{0}', space=smem, size = 0x200, scoped, tag = 'output window, operand 0, single buffered']
    #allocation4 [shape = 's32[2]{0}', space=sflag, size = 0x8, scoped, tag = 'scoped memory for focal_loss_2d.1']
    %7 = vsyncpa [#allocation4], 0
    loop: start=0, step=1, limit=4
    $region2: #{focal_loss_2d.1} parent=1 // loop_pre_header
      _
    $region3: #{focal_loss_2d.1} parent=1 // loop_header
      %s9 = sphi 0, %s13
      %p10 = scmp.ge.s32.totalorder %s9, 4
      %s16 = sphi 0, %s28
      %s17 = sphi 0, %s24
      %s18 = sphi 0, %s16
      %s19 = sphi 0, %s17
      %s20 = sphi 0, %s18
      %s21 = sphi 0, %s19
      %s33 = sphi 0, %s35
      %s36 = sphi 0, %s33
      %s37 = sphi 0, %s36
      %s53 = sphi 0, %s37
      %s61 = sphi 0, %s63
      %s64 = sphi 0, %s61
      %s65 = sphi 0, %s64
      %s81 = sphi 0, %s65
      %s85 = sphi 0, %s85
      %s87 = sphi 0, %s85
      %s88 = sphi 0, %s87
      %s102 = sphi 0, %s88
    $region4: #{focal_loss_2d.1} parent=1 // loop_header_branch
      %12 = sbr.rel (%p10) target = $region8
    $region5: #{focal_loss_2d.1} parent=1 // loop_body
      %s14 = ssub.s32 %s9, 1
      %s15 = ssub.s32 %s9, 2
      %s22 = sadd.s32 1, %s17
      %p23 = scmp.ge.s32.totalorder %s22, 1
      %s24 = scalar_select %p23, 0, %s22
      %s25 = sadd.s32 1, %s16
      %s26 = scalar_select %p23, %s25, %s16
      %p27 = scmp.ge.s32.totalorder %s26, 2
      %s28 = scalar_select %p27, 0, %s26
      %s29 = ssub.s32 %s16, %s28
      %s30 = ssub.s32 %s17, %s24
      %s31 = sor.u32 %s29, %s30
      %p32 = scmp.eq.s32.totalorder %s31, 0
      %s34 = sadd.s32 %s33, 1
      %s35 = scalar_select %p32, %s33, %s34
      %p38 = pneg %p32
      %p39 = scmp.eq.s32.totalorder %s9, 1
      %p40 = por %p38, %p39
      %p41 = scmp.ne.s32.totalorder %s33, %s36
      %p42 = scmp.eq.s32.totalorder %s9, 0
      %p43 = por %p41, %p42
      %p44 = scmp.ne.s32.totalorder %s33, %s36
      %p45 = scmp.eq.s32.totalorder %s14, 1
      %p46 = por %p44, %p45
      %p47 = scmp.ne.s32.totalorder %s36, %s37
      %p48 = scmp.eq.s32.totalorder %s14, 0
      %p49 = por %p47, %p48
      %p50 = scmp.ne.s32.totalorder %s36, %s37
      %p51 = scmp.eq.s32.totalorder %s15, 1
      %p52 = por %p50, %p51
      %p54 = scmp.ne.s32.totalorder %s37, %s53
      %p55 = scmp.eq.s32.totalorder %s15, 0
      %p56 = por %p54, %p55
      %s57 = ssub.s32 %s16, %s28
      %s58 = ssub.s32 %s17, %s24
      %s59 = sor.u32 %s57, %s58
      %p60 = scmp.eq.s32.totalorder %s59, 0
      %s62 = sadd.s32 %s61, 1
      %s63 = scalar_select %p60, %s61, %s62
      %p66 = pneg %p60
      %p67 = scmp.eq.s32.totalorder %s9, 1
      %p68 = por %p66, %p67
      %p69 = scmp.ne.s32.totalorder %s61, %s64
      %p70 = scmp.eq.s32.totalorder %s9, 0
      %p71 = por %p69, %p70
      %p72 = scmp.ne.s32.totalorder %s61, %s64
      %p73 = scmp.eq.s32.totalorder %s14, 1
      %p74 = por %p72, %p73
      %p75 = scmp.ne.s32.totalorder %s64, %s65
      %p76 = scmp.eq.s32.totalorder %s14, 0
      %p77 = por %p75, %p76
      %p78 = scmp.ne.s32.totalorder %s64, %s65
      %p79 = scmp.eq.s32.totalorder %s15, 1
      %p80 = por %p78, %p79
      %p82 = scmp.ne.s32.totalorder %s65, %s81
      %p83 = scmp.eq.s32.totalorder %s15, 0
      %p84 = por %p82, %p83
      %s86 = sadd.s32 %s85, 1
      %p89 = scmp.eq.s32.totalorder %s9, 1
      %p90 = scmp.ne.s32.totalorder %s85, %s87
      %p91 = scmp.eq.s32.totalorder %s9, 0
      %p92 = por %p90, %p91
      %p93 = scmp.ne.s32.totalorder %s85, %s87
      %p94 = scmp.eq.s32.totalorder %s14, 1
      %p95 = por %p93, %p94
      %p96 = scmp.ne.s32.totalorder %s87, %s88
      %p97 = scmp.eq.s32.totalorder %s14, 0
      %p98 = por %p96, %p97
      %p99 = scmp.ne.s32.totalorder %s87, %s88
      %p100 = scmp.eq.s32.totalorder %s15, 1
      %p101 = por %p99, %p100
      %p103 = scmp.ne.s32.totalorder %s88, %s102
      %p104 = scmp.eq.s32.totalorder %s15, 0
      %p105 = por %p103, %p104
      %p106 = scmp.le.s32.totalorder 1, %s9
      %p107 = scmp.lt.s32.totalorder %s9, 3
      %p108 = pnand %p106, %p107
      %p109 = pneg %p108
      // Predicated region
      $region9: #{focal_loss_2d.1} parent=5 // pred_check
        _
      $region10: #{focal_loss_2d.1} parent=5 // pred_check_branch
        %111 = sbr.rel (%p108) target = $region12
      $region11: #{focal_loss_2d.1} parent=5 // pred_region
        %s112 = ssub.s32 %s9, 1
      $region12: #{focal_loss_2d.1} parent=5 // pred_fallthru
        _
      %p113 = scmp.lt.s32.totalorder %s9, 2
      // Predicated region
      $region13: #{focal_loss_2d.1} parent=5 // pred_check
        %p114 = pneg %p113
      $region14: #{focal_loss_2d.1} parent=5 // pred_check_branch
        %116 = sbr.rel (%p114) target = $region16
      $region15: #{focal_loss_2d.1} parent=5 // pred_region
        // Predicated region
        $region17: #{focal_loss_2d.1} parent=15 // pred_check
          %p117 = pneg %p43
        $region18: #{focal_loss_2d.1} parent=15 // pred_check_branch
          %119 = sbr.rel (%p117) target = $region20
        $region19: #{focal_loss_2d.1} parent=15 // pred_region
          %s120 = smul.u32 2, %s17
          %p121 = scmp.lt.s32.totalorder %s16, 1
          %s122 = scalar_select %p121, %s16, 1
          %p123 = scmp.lt.s32.totalorder %s120, 1
          %s124 = scalar_select %p123, %s120, 1
          %s125 = smul.addr %s122, 2
          %s126 = sadd.s32 %s124, %s125
          %s127 = smul.addr %s126, 4
          %s128 = scalar_lea.vmem %s0, %s127
          %s129 = smul.u32 2, %s17
        $region20: #{focal_loss_2d.1} parent=15 // pred_fallthru
          _
        // Predicated region
        $region21: #{focal_loss_2d.1} parent=15 // pred_check
          %p130 = pneg %p71
        $region22: #{focal_loss_2d.1} parent=15 // pred_check_branch
          %132 = sbr.rel (%p130) target = $region24
        $region23: #{focal_loss_2d.1} parent=15 // pred_region
          %s133 = smul.u32 2, %s17
          %p134 = scmp.lt.s32.totalorder %s16, 1
          %s135 = scalar_select %p134, %s16, 1
          %p136 = scmp.lt.s32.totalorder %s133, 1
          %s137 = scalar_select %p136, %s133, 1
          %s138 = smul.addr %s135, 2
          %s139 = sadd.s32 %s137, %s138
          %s140 = scalar_lea.vmem %s1, %s139
          %s141 = smul.u32 2, %s17
        $region24: #{focal_loss_2d.1} parent=15 // pred_fallthru
          _
      $region16: #{focal_loss_2d.1} parent=5 // pred_fallthru
        _
      %p142 = scmp.le.s32.totalorder 1, %s9
      %p143 = scmp.lt.s32.totalorder %s9, 3
      %p144 = pnand %p142, %p143
      %p145 = pneg %p144
      // Predicated region
      $region25: #{focal_loss_2d.1} parent=5 // pred_check
        _
      $region26: #{focal_loss_2d.1} parent=5 // pred_check_branch
        %147 = sbr.rel (%p144) target = $region28
      $region27: #{focal_loss_2d.1} parent=5 // pred_region
        %s148 = ssub.s32 %s9, 1
        %s149 = smul.u32 2, %s19
        %p150 = scmp.lt.s32.totalorder %s18, 1
        %s151 = scalar_select %p150, %s18, 1
        %p152 = scmp.lt.s32.totalorder %s149, 1
        %s153 = scalar_select %p152, %s149, 1
        %s154 = smul.addr %s151, 2
        %s155 = sadd.s32 %s153, %s154
        %s156 = smul.addr %s155, 4
        %s157 = scalar_lea.vmem %s0, %s156
        %p158 = pneg %p49
        %p159 = pneg %p46
        %s160 = smul.u32 2, %s19
        %p161 = scmp.lt.s32.totalorder %s18, 1
        %s162 = scalar_select %p161, %s18, 1
        %p163 = scmp.lt.s32.totalorder %s160, 1
        %s164 = scalar_select %p163, %s160, 1
        %s165 = smul.addr %s162, 2
        %s166 = sadd.s32 %s164, %s165
        %s167 = scalar_lea.vmem %s1, %s166
        %p168 = pneg %p77
        %p169 = pneg %p74
        %p170 = pneg %p98
        %p171 = pneg %p95
        %s172 = smul.u32 2, %s19
        %p173 = scmp.lt.s32.totalorder %s18, 1
        %s174 = scalar_select %p173, %s18, 1
        %p175 = scmp.lt.s32.totalorder %s172, 1
        %s176 = scalar_select %p175, %s172, 1
        %s177 = smul.addr %s174, 2
        %s178 = sadd.s32 %s176, %s177
        %s179 = smul.addr %s178, 4
        %s180 = scalar_lea.vmem %s0, %s179
        %s181 = smul.u32 2, %s19
        %s182 = smul.u32 2, %s19
        %p183 = scmp.lt.s32.totalorder %s18, 1
        %s184 = scalar_select %p183, %s18, 1
        %p185 = scmp.lt.s32.totalorder %s182, 1
        %s186 = scalar_select %p185, %s182, 1
        %s187 = smul.addr %s184, 2
        %s188 = sadd.s32 %s186, %s187
        %s189 = scalar_lea.vmem %s1, %s188
        %s190 = smul.u32 2, %s19
        %p191 = scmp.eq.s32.totalorder %s18, 0
        %p192 = scmp.eq.s32.totalorder %s19, 0
        %p193 = pnand %p191, %p192
        %p194 = pneg %p193
        %p195 = scmp.eq.s32.totalorder %s18, 1
        %p196 = pnand %p195, %p192
        %p197 = pneg %p196
        // Predicated region
        $region29: #{focal_loss_2d.1} parent=27 // pred_check
          _
        $region30: #{focal_loss_2d.1} parent=27 // pred_check_branch
          %199 = sbr.rel (%p193) target = $region32
        $region31: #{focal_loss_2d.1} parent=27 // pred_region
          %200 = vst [vmem:[#allocation2] sm:$0xf] 0.0
          %s201 = scalar_lea.smem [#allocation3], 0
          %202 = sst [smem:[%s201]] 0.0
          %s203 = scalar_lea.smem [#allocation3], 1
          %204 = sst [smem:[%s203]] 0.0
        $region32: #{focal_loss_2d.1} parent=27 // pred_fallthru
          _
        %v205 = vld [vmem:[%s180] sm:$0xff]
        %v206 = vld [vmem:[%s189] sm:$0x3]
        %v207 = vlaneseq
        %v208 = vand.u32 %v207, 127
        %v209 = vadd.s32 %v208, 128
        %s210 = smul.u32 %s19, 256
        %v211 = vstv %s210
        %v212 = vadd.s32 %v211, %v208
        %v213 = vadd.s32 %v211, %v209
        %vm214 = vcmp.lt.s32.totalorder %v212, 256
        %vm215 = vcmp.lt.s32.totalorder %v213, 256
        %vm216 = vcmp.ne.s32.totalorder %v206, 255
        %v217 = vsel %vm214, 1, 0
        %v218 = vsel %vm215, 1, 0
        %v219 = vrot.slane %v218, 7
        %vm220 = vcmask 1040384
        %v221 = vsel %vm220, %v217, %v219
        %vm222 = vcmp.ne.s32.totalorder %v221, 0
        %vm223 = vmand %vm216, %vm222
        %v224 = vsel %vm223, %v206, 0
        %v226 = vrot.slane %v205, 5
        %v227 = vrot.slane %v226, 4
        %v229 = vmax.f32 %v205, %v227
        %v230 = vrot.slane %v205, 6
        %v231 = vrot.slane %v230, 4
        %v233 = vmax.f32 %v229, %v231
        %v234 = vrot.slane %v205, 7
        %v235 = vrot.slane %v234, 4
        %v237 = vmax.f32 %v233, %v235
        %v238 = vsub.f32 %v205, %v237
        %v239 = vmul.f32 %v238, 1.442695
        %v240 = vpow.pop %v239
        %v241 = vadd.f32 %v240, 0.0
        %vm242 = vcmp.eq.s32.totalorder %v224, 0
        %v243 = vrot.slane %v205, 3
        %v244 = vsel %vm220, %v205, %v243
        %v246 = vsel %vm242, %v244, 0.0
        %v248 = vrot.slane %v237, 7
        %v250 = vsub.f32 %v205, %v248
        %v251 = vmul.f32 %v250, 1.442695
        %v252 = vpow.pop %v251
        %v254 = vrot.slane %v252, 5
        %v255 = vrot.slane %v254, 4
        %v257 = vadd.f32 %v241, %v255
        %vm258 = vcmp.eq.s32.totalorder %v224, 1
        %259 = vst [vmem:[#allocation1] sm:$0xff] %v205
        %s260 = scalar_lea.vmem [#allocation1], 1
        %v261 = vld [vmem:[%s260] ss:$4 sm:$0xff]
        %v263 = vsel %vm258, %v261, %v246
        %v264 = vrot.slane %v237, 6
        %v266 = vsub.f32 %v205, %v264
        %v267 = vmul.f32 %v266, 1.442695
        %v268 = vpow.pop %v267
        %v270 = vrot.slane %v268, 6
        %v271 = vrot.slane %v270, 4
        %v273 = vadd.f32 %v257, %v271
        %vm274 = vcmp.eq.s32.totalorder %v224, 2
        %275 = vst [vmem:[#allocation1] sm:$0xff] %v205
        %s276 = scalar_lea.vmem [#allocation1], 2
        %v277 = vld [vmem:[%s276] ss:$4 sm:$0xff]
        %v279 = vsel %vm274, %v277, %v263
        %v280 = vrot.slane %v237, 5
        %v282 = vsub.f32 %v205, %v280
        %v283 = vmul.f32 %v282, 1.442695
        %v284 = vpow.pop %v283
        %v286 = vrot.slane %v284, 7
        %v287 = vrot.slane %v286, 4
        %v289 = vadd.f32 %v273, %v287
        %vm290 = vcmp.eq.s32.totalorder %v224, 3
        %291 = vst [vmem:[#allocation1] sm:$0xff] %v205
        %s292 = scalar_lea.vmem [#allocation1], 3
        %v293 = vld [vmem:[%s292] ss:$4 sm:$0xff]
        %v295 = vsel %vm290, %v293, %v279
        %v296 = vrot.slane %v237, 3
        %v297 = vsel %vm220, %v237, %v296
        %v299 = vsub.f32 %v295, %v297
        %v300 = vlog2.pop %v289
        %v301 = vmul.f32 %v300, 0.6931472
        %v303 = vrot.slane %v301, 3
        %v304 = vsel %vm220, %v301, %v303
        %v306 = vsub.f32 %v299, %v304
        %v307 = vmul.f32 %v306, 1.442695
        %v308 = vpow.pop %v307
        %v309 = vsub.f32 1.0, %v308
        %v310 = vmul.f32 %v309, %v309
        %v311 = vmul.f32 %v310, %v306
        %v312 = vld [vmem:[#allocation2] ss:$2 sm:$0x3]
        %v313 = vsub.f32 0.0, %v311
        %v314 = vsel %vm223, %v313, 0.0
        %v315 = vadd.f32 %v312, %v314
        %v316 = vlaneseq
        %vm317 = vcmp.ge.s32.totalorder %v316, 0
        %vm318 = vcmp.lt.s32.totalorder %v316, 256
        %vm319 = vmand %vm317, %vm318
        %320 = vst.msk [vmem:[#allocation2] ss:$2 sm:$0x3] %vm319, %v315
        %s321 = scalar_lea.vmem [#allocation2], 1
        %v322 = vld [vmem:[%s321] ss:$2 sm:$0x3]
        %v323 = vsel %vm223, 1.0, 0.0
        %v324 = vadd.f32 %v322, %v323
        %325 = vst.msk [vmem:[%s321] ss:$2 sm:$0x3] %vm319, %v324
        // Predicated region
        $region33: #{focal_loss_2d.1} parent=27 // pred_check
          _
        $region34: #{focal_loss_2d.1} parent=27 // pred_check_branch
          %327 = sbr.rel (%p196) target = $region36
        $region35: #{focal_loss_2d.1} parent=27 // pred_region
          %v328 = vld [vmem:[#allocation2] ss:$2 sm:$0x3]
          %v330 = vperm.slane %v328, 0
          %v331 = vperm.slane %v328, 1
          %v334 = vsel %vm220, %v330, 0.0
          %v335 = vsel %vm220, %v331, 0.0
          %v336 = vadd.f32 %v334, %v335
          %337 = vadd.xlane.f32.xlu0 %v336
          %v338 = vpop.xlane.xlu0 %337
          %v339 = vrot.slane %v338, 4
          %v340 = vadd.f32 %v338, %v339
          %v341 = vrot.slane %v340, 2
          %v342 = vadd.f32 %v340, %v341
          %v343 = vrot.slane %v342, 1
          %v344 = vadd.f32 %v342, %v343
          %s345 = vtos %v344
          %s346 = scalar_lea.smem [#allocation3], 0
          %347 = sst [smem:[%s346]] %s345
          %v348 = vld [vmem:[%s321] ss:$2 sm:$0x3]
          %v350 = vperm.slane %v348, 0
          %v351 = vperm.slane %v348, 1
          %v354 = vsel %vm220, %v350, 0.0
          %v355 = vsel %vm220, %v351, 0.0
          %v356 = vadd.f32 %v354, %v355
          %357 = vadd.xlane.f32.xlu0 %v356
          %v358 = vpop.xlane.xlu0 %357
          %v359 = vrot.slane %v358, 4
          %v360 = vadd.f32 %v358, %v359
          %v361 = vrot.slane %v360, 2
          %v362 = vadd.f32 %v360, %v361
          %v363 = vrot.slane %v362, 1
          %v364 = vadd.f32 %v362, %v363
          %s365 = vtos %v364
          %s366 = scalar_lea.smem [#allocation3], 1
          %367 = sst [smem:[%s366]] %s365
        $region36: #{focal_loss_2d.1} parent=27 // pred_fallthru
          _
        // Predicated region
        $region37: #{focal_loss_2d.1} parent=27 // pred_check
          %p368 = pneg %p95
        $region38: #{focal_loss_2d.1} parent=27 // pred_check_branch
          %370 = sbr.rel (%p368) target = $region40
        $region39: #{focal_loss_2d.1} parent=27 // pred_region
          %372 = vsyncadd [#allocation4], 0
          %s374 = sshll.u32 %s2, 4
          %s375 = int_to_ptr.vmem [resolvable:$true] %s374
          %377 = dma.smem_to_vmem [#allocation3], 16, %s375, [#allocation4]
        $region40: #{focal_loss_2d.1} parent=27 // pred_fallthru
          _
        // Predicated region
        $region41: #{focal_loss_2d.1} parent=27 // pred_check
          %p378 = pneg %p95
        $region42: #{focal_loss_2d.1} parent=27 // pred_check_branch
          %380 = sbr.rel (%p378) target = $region44
        $region43: #{focal_loss_2d.1} parent=27 // pred_region
          %382 = dma.done [#allocation4], 16
        $region44: #{focal_loss_2d.1} parent=27 // pred_fallthru
          _
        %383 = sfence
      $region28: #{focal_loss_2d.1} parent=5 // pred_fallthru
        _
      %p384 = scmp.le.s32.totalorder 2, %s9
      // Predicated region
      $region45: #{focal_loss_2d.1} parent=5 // pred_check
        %p385 = pneg %p384
      $region46: #{focal_loss_2d.1} parent=5 // pred_check_branch
        %387 = sbr.rel (%p385) target = $region48
      $region47: #{focal_loss_2d.1} parent=5 // pred_region
        %s388 = ssub.s32 %s9, 2
      $region48: #{focal_loss_2d.1} parent=5 // pred_fallthru
        _
    $region6: #{focal_loss_2d.1} parent=1 // loop_footer
      %s13 = sadd.s32 1, %s9
    $region7: #{focal_loss_2d.1} parent=1 // loop_footer_branch
      %8 = sbr.rel target = $region3
    $region8: #{focal_loss_2d.1} parent=1 // loop_exit
      _
    %389 = vsyncpa [#allocation4], 1
    %s390 = scalar_lea.sflag [#allocation4], 1
    %391 = vsyncpa %s390, 1

</llo_original>
